<compile_context>
chip_gen: v7x
topology: tpu7x:2x2x1
jax: 0.10.0
libtpu: 0.0.40
codegen_flags: <defaults>
</compile_context>

<pallas_src>
import functools

import jax
import jax.numpy as jnp
from jax.experimental import pallas as pl
from jax.experimental.pallas import tpu as pltpu


def _round_up(x, m):
    return ((x + m - 1) // m) * m


def _vmem_config():
    """Generation-aware VMEM limits (v5e/v6e: 128 MiB physical, v7x: 64 MiB/TC)."""
    try:
        cap = int(pltpu.get_tpu_info().vmem_capacity_bytes)
    except Exception:  # interpret mode / non-TPU tracing fallback
        cap = 128 * 1024 * 1024
    vmem_limit = min(64 * 1024 * 1024, (cap * 7) // 10)  # ~44 MiB on v7x, 64 MiB on v5e/v6e
    block_budget = (vmem_limit * 3) // 4                 # headroom for Mosaic scratch
    return vmem_limit, block_budget


def _pick_m_tile(M, mt_min, cin, cout, itemsize, budget):
    """Largest lane tile (multiple of 128) whose double-buffered cur/next/out
    blocks fit the VMEM budget; capped near M so tiny images don't over-pad."""
    cap = max(mt_min, _round_up(M, 128))
    for cand in (8192, 4096, 2048, 1024, 512, 256, 128):
        if cand < mt_min or cand > cap:
            continue
        need = 2 * (2 * cin + cout) * cand * itemsize    # 2 bufs x (cur + next + out)
        if need <= budget:
            return cand
    return _round_up(mt_min, 128)


@functools.partial(jax.jit, static_argnames=("compute_dtype",))
def conv2d_std_forward(x_nchw, weight_oihw, compute_dtype=None):
    """Equivalent of conv2d_std(in_c, out_c, k).forward(x) with stride=1,
    dilation=1, groups=1, bias=False, reflect padding of k//2."""
    # TODO(synk): stride!=1 / dilation!=1 / groups!=1 variants are not implemented
    # (the module's defaults, as used by conv2d_std, are stride=1, dilation=1, groups=1).
    Cout, Cin, K, K2 = weight_oihw.shape
    assert K == K2, "square kernels only"
    N, C, H, W = x_nchw.shape
    assert C == Cin
    pad = K // 2
    assert pad < H and pad < W, "reflect pad requires kernel_size//2 < spatial dims"

    Hout = H + 2 * pad - (K - 1)
    Wout = W + 2 * pad - (K - 1)
    Hp, Wp = H + 2 * pad, W + 2 * pad

    out_dtype = x_nchw.dtype
    op_dtype = jnp.dtype(compute_dtype) if compute_dtype is not None else jnp.dtype(out_dtype)
    isz = op_dtype.itemsize

    # --- glue: reflect pad (matches torch padding_mode='reflect'), flatten ---
    x_pad = jnp.pad(x_nchw, ((0, 0), (0, 0), (pad, pad), (pad, pad)), mode="reflect")
    xf = x_pad.reshape(N, Cin, Hp * Wp).astype(op_dtype)          # free reshape

    # weights -> (K*K, Cout, Cin), tap-major (tiny; constant across the grid)
    w_r = jnp.transpose(weight_oihw, (2, 3, 0, 1)).reshape(K * K, Cout, Cin).astype(op_dtype)

    # --- tiling ---------------------------------------------------------------
    M = Hout * Wp                          # flat output length in padded-width layout
    s_max = (K - 1) * Wp + (K - 1)         # largest in-kernel flat shift
    mt_min = _round_up(s_max + 1, 128)     # tile must cover the halo shift
    vmem_limit, budget = _vmem_config()
    Mt = _pick_m_tile(M, mt_min, Cin, Cout, isz, budget)
    n_m = -(-M // Mt)
    # keep >= 2 total grid steps so both v7x TensorCores get work
    while N * n_m < 2 and Mt % 256 == 0 and Mt // 2 >= mt_min:
        Mt //= 2
        n_m = -(-M // Mt)
    M_pad = n_m * Mt
    L = M_pad + Mt                          # one extra tile so the "next" block always exists

    xf = jnp.pad(xf, ((0, 0), (0, 0), (0, L - Hp * Wp)))

    # --- kernel ---------------------------------------------------------------
    def kernel(w_ref, xc_ref, xn_ref, o_ref):
        # Current tile + right neighbour; every tap is a static slice of `both`
        # (in-VMEM patch construction, no HBM im2col).
        both = jnp.concatenate([xc_ref[0], xn_ref[0]], axis=-1)    # (Cin, 2*Mt)
        acc = None
        for kh in range(K):
            for kw in range(K):
                s = kh * Wp + kw                                   # static shift
                tap = jax.lax.slice(both, (0, s), (Cin, s + Mt))   # (Cin, Mt)
                part = jnp.dot(w_ref[kh * K + kw], tap,
                               preferred_element_type=jnp.float32)
                acc = part if acc is None else acc + part
        o_ref[0] = acc.astype(o_ref.dtype)

    flops = 2 * N * Cout * K * K * Cin * M_pad
    bytes_accessed = (2 * N * Cin * L * isz                      # cur + next reads
                      + int(w_r.size) * isz
                      + N * Cout * M_pad * jnp.dtype(out_dtype).itemsize)

    out_flat = pl.pallas_call(
        kernel,
        out_shape=jax.ShapeDtypeStruct((N, Cout, M_pad), out_dtype),
        grid=(N, n_m),
        in_specs=[
            pl.BlockSpec((K * K, Cout, Cin), lambda n, m: (0, 0, 0)),
            pl.BlockSpec((1, Cin, Mt), lambda n, m: (n, 0, m)),        # current tile
            pl.BlockSpec((1, Cin, Mt), lambda n, m: (n, 0, m + 1)),    # halo (next tile)
        ],
        out_specs=pl.BlockSpec((1, Cout, Mt), lambda n, m: (n, 0, m)),
        compiler_params=pltpu.CompilerParams(
            dimension_semantics=("parallel", "parallel"),
            vmem_limit_bytes=vmem_limit,
        ),
        cost_estimate=pl.CostEstimate(
            flops=flops, transcendentals=0, bytes_accessed=bytes_accessed),
        # TODO(synk): pipeline_mode=pl.Buffered(3) on the x specs could hide a bit
        # more DMA latency when per-step compute is tiny; default depth 2 kept.
    )(w_r, xf, xf)

    # (N, Cout, Hout*Wp) -> NCHW: drop the padded-width garbage columns.
    out = out_flat[:, :, :M].reshape(N, Cout, Hout, Wp)[:, :, :, :Wout]
    return out


if __name__ == "__main__":
    # small deterministic config consistent with the module
    batch, in_channels, out_channels = 2, 4, 8
    H = W = 16
    kernel_size = 3

    key = jax.random.PRNGKey(0)
    kx, kw = jax.random.split(key)
    x = jax.random.normal(kx, (batch, in_channels, H, W), dtype=jnp.float32)
    # deterministic synthetic weight (nn.Conv2d weight shape: O, I, K, K)
    fan_in = in_channels * kernel_size * kernel_size
    weight = jax.random.normal(
        kw, (out_channels, in_channels, kernel_size, kernel_size),
        dtype=jnp.float32) * (1.0 / jnp.sqrt(fan_in))

    out = conv2d_std_forward(x, weight)
    out = jax.block_until_ready(out)

    # correctness check against XLA's conv on the same reflect-padded input
    pad = kernel_size // 2
    x_pad_nchw = jnp.pad(x, ((0, 0), (0, 0), (pad, pad), (pad, pad)),
                         mode="reflect")
    ref = jax.lax.conv_general_dilated(
        x_pad_nchw, weight, window_strides=(1, 1), padding="VALID",
        dimension_numbers=("NCHW", "OIHW", "NCHW"))
    assert out.shape == ref.shape, (out.shape, ref.shape)
    assert jnp.allclose(out, ref, atol=1e-3, rtol=1e-3)

    print("KERNEL_OK")
</pallas_src>

<mosaic_0001>
module attributes {stable_mosaic.version = 11 : i64} {
  func.func @kernel(%arg0: i32, %arg1: i32, %arg2: memref<9x8x4xf32, #tpu.memory_space<vmem>>, %arg3: memref<1x4x256xf32, #tpu.memory_space<vmem>>, %arg4: memref<1x4x256xf32, #tpu.memory_space<vmem>>, %arg5: memref<1x8x256xf32, #tpu.memory_space<vmem>>) attributes {dimension_semantics = [#tpu.dimension_semantics<parallel>, #tpu.dimension_semantics<parallel>], iteration_bounds = array<i64: 2, 2>, scalar_prefetch = 0 : i64, scratch_operands = 0 : i64, tpu.core_type = #tpu.core_type<tc>, window_params = [{pipeline_mode = #tpu.pipeline_mode<synchronous>, transform_indices = @transform_0, window_bounds = array<i64: 9, 8, 4>}, {transform_indices = @transform_1, window_bounds = array<i64: 1, 4, 256>}, {transform_indices = @transform_2, window_bounds = array<i64: 1, 4, 256>}, {transform_indices = @transform_3, window_bounds = array<i64: 1, 8, 256>}]} {
    %c0 = arith.constant 0 : index
    %c0_0 = arith.constant 0 : index
    %c0_1 = arith.constant 0 : index
    %0 = vector.load %arg3[%c0, %c0_0, %c0_1] : memref<1x4x256xf32, #tpu.memory_space<vmem>>, vector<1x4x256xf32>
    %1 = vector.shape_cast %0 : vector<1x4x256xf32> to vector<4x256xf32>
    %c0_2 = arith.constant 0 : index
    %c0_3 = arith.constant 0 : index
    %c0_4 = arith.constant 0 : index
    %2 = vector.load %arg4[%c0_2, %c0_3, %c0_4] : memref<1x4x256xf32, #tpu.memory_space<vmem>>, vector<1x4x256xf32>
    %3 = vector.shape_cast %2 : vector<1x4x256xf32> to vector<4x256xf32>
    %4 = tpu.concatenate %1, %3 in 1 : vector<4x256xf32>, vector<4x256xf32> -> vector<4x512xf32>
    %5 = vector.extract_strided_slice %4 {offsets = [0, 0], sizes = [4, 256], strides = [1, 1]} : vector<4x512xf32> to vector<4x256xf32>
    %c0_5 = arith.constant 0 : index
    %c0_6 = arith.constant 0 : index
    %c0_7 = arith.constant 0 : index
    %6 = vector.load %arg2[%c0_5, %c0_6, %c0_7] : memref<9x8x4xf32, #tpu.memory_space<vmem>>, vector<1x8x4xf32>
    %7 = vector.shape_cast %6 : vector<1x8x4xf32> to vector<8x4xf32>
    %cst = arith.constant dense<0.000000e+00> : vector<8x256xf32>
    %8 = tpu.matmul %7, %5, %cst {dimension_numbers = #tpu.dot_dimension_numbers<[1], [0], [0], [1], [0, 0, 1, 1], [], []>} : vector<8x4xf32>, vector<4x256xf32>, vector<8x256xf32> -> vector<8x256xf32>
    %9 = vector.extract_strided_slice %4 {offsets = [0, 1], sizes = [4, 256], strides = [1, 1]} : vector<4x512xf32> to vector<4x256xf32>
    %c1 = arith.constant 1 : index
    %c0_8 = arith.constant 0 : index
    %c0_9 = arith.constant 0 : index
    %10 = vector.load %arg2[%c1, %c0_8, %c0_9] : memref<9x8x4xf32, #tpu.memory_space<vmem>>, vector<1x8x4xf32>
    %11 = vector.shape_cast %10 : vector<1x8x4xf32> to vector<8x4xf32>
    %cst_10 = arith.constant dense<0.000000e+00> : vector<8x256xf32>
    %12 = tpu.matmul %11, %9, %cst_10 {dimension_numbers = #tpu.dot_dimension_numbers<[1], [0], [0], [1], [0, 0, 1, 1], [], []>} : vector<8x4xf32>, vector<4x256xf32>, vector<8x256xf32> -> vector<8x256xf32>
    %13 = arith.addf %8, %12 : vector<8x256xf32>
    %14 = vector.extract_strided_slice %4 {offsets = [0, 2], sizes = [4, 256], strides = [1, 1]} : vector<4x512xf32> to vector<4x256xf32>
    %c2 = arith.constant 2 : index
    %c0_11 = arith.constant 0 : index
    %c0_12 = arith.constant 0 : index
    %15 = vector.load %arg2[%c2, %c0_11, %c0_12] : memref<9x8x4xf32, #tpu.memory_space<vmem>>, vector<1x8x4xf32>
    %16 = vector.shape_cast %15 : vector<1x8x4xf32> to vector<8x4xf32>
    %cst_13 = arith.constant dense<0.000000e+00> : vector<8x256xf32>
    %17 = tpu.matmul %16, %14, %cst_13 {dimension_numbers = #tpu.dot_dimension_numbers<[1], [0], [0], [1], [0, 0, 1, 1], [], []>} : vector<8x4xf32>, vector<4x256xf32>, vector<8x256xf32> -> vector<8x256xf32>
    %18 = arith.addf %13, %17 : vector<8x256xf32>
    %19 = vector.extract_strided_slice %4 {offsets = [0, 18], sizes = [4, 256], strides = [1, 1]} : vector<4x512xf32> to vector<4x256xf32>
    %c3 = arith.constant 3 : index
    %c0_14 = arith.constant 0 : index
    %c0_15 = arith.constant 0 : index
    %20 = vector.load %arg2[%c3, %c0_14, %c0_15] : memref<9x8x4xf32, #tpu.memory_space<vmem>>, vector<1x8x4xf32>
    %21 = vector.shape_cast %20 : vector<1x8x4xf32> to vector<8x4xf32>
    %cst_16 = arith.constant dense<0.000000e+00> : vector<8x256xf32>
    %22 = tpu.matmul %21, %19, %cst_16 {dimension_numbers = #tpu.dot_dimension_numbers<[1], [0], [0], [1], [0, 0, 1, 1], [], []>} : vector<8x4xf32>, vector<4x256xf32>, vector<8x256xf32> -> vector<8x256xf32>
    %23 = arith.addf %18, %22 : vector<8x256xf32>
    %24 = vector.extract_strided_slice %4 {offsets = [0, 19], sizes = [4, 256], strides = [1, 1]} : vector<4x512xf32> to vector<4x256xf32>
    %c4 = arith.constant 4 : index
    %c0_17 = arith.constant 0 : index
    %c0_18 = arith.constant 0 : index
    %25 = vector.load %arg2[%c4, %c0_17, %c0_18] : memref<9x8x4xf32, #tpu.memory_space<vmem>>, vector<1x8x4xf32>
    %26 = vector.shape_cast %25 : vector<1x8x4xf32> to vector<8x4xf32>
    %cst_19 = arith.constant dense<0.000000e+00> : vector<8x256xf32>
    %27 = tpu.matmul %26, %24, %cst_19 {dimension_numbers = #tpu.dot_dimension_numbers<[1], [0], [0], [1], [0, 0, 1, 1], [], []>} : vector<8x4xf32>, vector<4x256xf32>, vector<8x256xf32> -> vector<8x256xf32>
    %28 = arith.addf %23, %27 : vector<8x256xf32>
    %29 = vector.extract_strided_slice %4 {offsets = [0, 20], sizes = [4, 256], strides = [1, 1]} : vector<4x512xf32> to vector<4x256xf32>
    %c5 = arith.constant 5 : index
    %c0_20 = arith.constant 0 : index
    %c0_21 = arith.constant 0 : index
    %30 = vector.load %arg2[%c5, %c0_20, %c0_21] : memref<9x8x4xf32, #tpu.memory_space<vmem>>, vector<1x8x4xf32>
    %31 = vector.shape_cast %30 : vector<1x8x4xf32> to vector<8x4xf32>
    %cst_22 = arith.constant dense<0.000000e+00> : vector<8x256xf32>
    %32 = tpu.matmul %31, %29, %cst_22 {dimension_numbers = #tpu.dot_dimension_numbers<[1], [0], [0], [1], [0, 0, 1, 1], [], []>} : vector<8x4xf32>, vector<4x256xf32>, vector<8x256xf32> -> vector<8x256xf32>
    %33 = arith.addf %28, %32 : vector<8x256xf32>
    %34 = vector.extract_strided_slice %4 {offsets = [0, 36], sizes = [4, 256], strides = [1, 1]} : vector<4x512xf32> to vector<4x256xf32>
    %c6 = arith.constant 6 : index
    %c0_23 = arith.constant 0 : index
    %c0_24 = arith.constant 0 : index
    %35 = vector.load %arg2[%c6, %c0_23, %c0_24] : memref<9x8x4xf32, #tpu.memory_space<vmem>>, vector<1x8x4xf32>
    %36 = vector.shape_cast %35 : vector<1x8x4xf32> to vector<8x4xf32>
    %cst_25 = arith.constant dense<0.000000e+00> : vector<8x256xf32>
    %37 = tpu.matmul %36, %34, %cst_25 {dimension_numbers = #tpu.dot_dimension_numbers<[1], [0], [0], [1], [0, 0, 1, 1], [], []>} : vector<8x4xf32>, vector<4x256xf32>, vector<8x256xf32> -> vector<8x256xf32>
    %38 = arith.addf %33, %37 : vector<8x256xf32>
    %39 = vector.extract_strided_slice %4 {offsets = [0, 37], sizes = [4, 256], strides = [1, 1]} : vector<4x512xf32> to vector<4x256xf32>
    %c7 = arith.constant 7 : index
    %c0_26 = arith.constant 0 : index
    %c0_27 = arith.constant 0 : index
    %40 = vector.load %arg2[%c7, %c0_26, %c0_27] : memref<9x8x4xf32, #tpu.memory_space<vmem>>, vector<1x8x4xf32>
    %41 = vector.shape_cast %40 : vector<1x8x4xf32> to vector<8x4xf32>
    %cst_28 = arith.constant dense<0.000000e+00> : vector<8x256xf32>
    %42 = tpu.matmul %41, %39, %cst_28 {dimension_numbers = #tpu.dot_dimension_numbers<[1], [0], [0], [1], [0, 0, 1, 1], [], []>} : vector<8x4xf32>, vector<4x256xf32>, vector<8x256xf32> -> vector<8x256xf32>
    %43 = arith.addf %38, %42 : vector<8x256xf32>
    %44 = vector.extract_strided_slice %4 {offsets = [0, 38], sizes = [4, 256], strides = [1, 1]} : vector<4x512xf32> to vector<4x256xf32>
    %c8 = arith.constant 8 : index
    %c0_29 = arith.constant 0 : index
    %c0_30 = arith.constant 0 : index
    %45 = vector.load %arg2[%c8, %c0_29, %c0_30] : memref<9x8x4xf32, #tpu.memory_space<vmem>>, vector<1x8x4xf32>
    %46 = vector.shape_cast %45 : vector<1x8x4xf32> to vector<8x4xf32>
    %cst_31 = arith.constant dense<0.000000e+00> : vector<8x256xf32>
    %47 = tpu.matmul %46, %44, %cst_31 {dimension_numbers = #tpu.dot_dimension_numbers<[1], [0], [0], [1], [0, 0, 1, 1], [], []>} : vector<8x4xf32>, vector<4x256xf32>, vector<8x256xf32> -> vector<8x256xf32>
    %48 = arith.addf %43, %47 : vector<8x256xf32>
    %c0_32 = arith.constant 0 : index
    %c0_33 = arith.constant 0 : index
    %c0_34 = arith.constant 0 : index
    %49 = vector.load %arg5[%c0_32, %c0_33, %c0_34] : memref<1x8x256xf32, #tpu.memory_space<vmem>>, vector<1x8x256xf32>
    %50 = vector.shape_cast %49 : vector<1x8x256xf32> to vector<8x256xf32>
    %51 = vector.shape_cast %48 : vector<8x256xf32> to vector<1x8x256xf32>
    tpu.vector_store %arg5[%c0_32, %c0_33, %c0_34], %51 {strides = array<i32>} : memref<1x8x256xf32, #tpu.memory_space<vmem>>, vector<1x8x256xf32>,
    return
  }
  func.func @transform_0(%arg0: i32, %arg1: i32) -> (i32, i32, i32) {
    %c0_i32 = arith.constant 0 : i32
    %c0_i32_0 = arith.constant 0 : i32
    %c0_i32_1 = arith.constant 0 : i32
    %c0_i32_2 = arith.constant 0 : i32
    return %c0_i32, %c0_i32_0, %c0_i32_1 : i32, i32, i32
  }
  func.func @transform_1(%arg0: i32, %arg1: i32) -> (i32, i32, i32) {
    %c0_i32 = arith.constant 0 : i32
    %c0_i32_0 = arith.constant 0 : i32
    return %arg0, %c0_i32, %arg1 : i32, i32, i32
  }
  func.func @transform_2(%arg0: i32, %arg1: i32) -> (i32, i32, i32) {
    %c1_i32 = arith.constant 1 : i32
    %0 = arith.addi %arg1, %c1_i32 : i32
    %c0_i32 = arith.constant 0 : i32
    %c0_i32_0 = arith.constant 0 : i32
    return %arg0, %c0_i32, %0 : i32, i32, i32
  }
  func.func @transform_3(%arg0: i32, %arg1: i32) -> (i32, i32, i32) {
    %c0_i32 = arith.constant 0 : i32
    %c0_i32_0 = arith.constant 0 : i32
    return %arg0, %c0_i32, %arg1 : i32, i32, i32
  }
}

</mosaic_0001>

<llo_original>
// kernel: conv2d_std_forward.1
$region0: #{conv2d_std_forward.1}
  #allocation0 [shape = 'u32[]', space=smem, size = 0x4, offset = 0x4, fixed_abs, tag = 'smem constant byte address 0x4 - core index']
  #allocation1 [shape = 'u32[144,128]{1,0:T(1,128)}', space=vmem, size = 0x12000, scoped, tag = 'internal scratch']
  %s0 = inlined_call_operand.hbm [shape: f32[9,8,4], index: 0, kind: input, shape index: {}]
  %s1 = inlined_call_operand.hbm [shape: f32[2,4,768], index: 1, kind: input, shape index: {}, may-alias: {1,2}]
  %s2 = inlined_call_operand.hbm [shape: f32[2,4,768], index: 2, kind: input, shape index: {}, may-alias: {1,2}]
  %s3 = inlined_call_operand.hbm [shape: f32[2,8,512], index: 3, kind: output, shape index: {}]
  %s4 = sld [smem:[#allocation0]]
  $region57: #{conv2d_std_forward.1} parent=0
    _
  %s6 = ssub.s32 1, %s4
  %s7 = scalar_select 0, %s6, %s4
  $region1: #{conv2d_std_forward.1} parent=0
    #allocation2 [shape = 'u8[36864]{0}', space=vmem, size = 0x9000, scoped, tag = 'input window, operand 0, single buffered']
    #allocation3 [shape = 's32[2]{0}', space=sflag, size = 0x8, scoped, tag = 'scoped memory for conv2d_std_forward.1']
    #allocation4 [shape = 's32[2]{0}', space=sflag, size = 0x8, scoped, tag = 'scoped memory for conv2d_std_forward.1']
    #allocation5 [shape = 'u8[8192]{0}', space=vmem, size = 0x2000, scoped, tag = 'input window, operand 1']
    #allocation6 [shape = 's32[2]{0}', space=sflag, size = 0x8, scoped, tag = 'scoped memory for conv2d_std_forward.1']
    #allocation7 [shape = 'u8[8192]{0}', space=vmem, size = 0x2000, scoped, tag = 'input window, operand 2']
    #allocation8 [shape = 'u8[16384]{0}', space=vmem, size = 0x4000, scoped, tag = 'output window, operand 0']
    %8 = vsyncpa [#allocation3], 0
    %9 = vsyncpa [#allocation6], 0
    %s10 = scalar_lea.sflag [#allocation6], 1
    %11 = vsyncpa %s10, 0
    %12 = vsyncpa [#allocation4], 0
    %s13 = scalar_lea.sflag [#allocation4], 1
    %14 = vsyncpa %s13, 0
    loop: start=0, step=1, limit=6
    $region2: #{conv2d_std_forward.1} parent=1 // loop_pre_header
      _
    $region3: #{conv2d_std_forward.1} parent=1 // loop_header
      %s16 = sphi 0, %s20
      %p17 = scmp.ge.s32.totalorder %s16, 6
      %s23 = sphi 0, %s35
      %s24 = sphi 0, %s31
      %s25 = sphi 0, %s23
      %s26 = sphi 0, %s24
      %s27 = sphi 0, %s25
      %s28 = sphi 0, %s26
      %s36 = sphi 0, %s36
      %s38 = sphi 0, %s36
      %s39 = sphi 0, %s38
      %s53 = sphi 0, %s39
      %s61 = sphi 0, %s63
      %s64 = sphi 0, %s61
      %s65 = sphi 0, %s64
      %s81 = sphi 0, %s65
      %s91 = sphi 0, %s93
      %s94 = sphi 0, %s91
      %s95 = sphi 0, %s94
      %s111 = sphi 0, %s95
      %s119 = sphi 0, %s121
      %s122 = sphi 0, %s119
      %s123 = sphi 0, %s122
      %s139 = sphi 0, %s123
    $region4: #{conv2d_std_forward.1} parent=1 // loop_header_branch
      %19 = sbr.rel (%p17) target = $region8
    $region5: #{conv2d_std_forward.1} parent=1 // loop_body
      %s21 = ssub.s32 %s16, 1
      %s22 = ssub.s32 %s16, 2
      %s29 = sadd.s32 1, %s24
      %p30 = scmp.ge.s32.totalorder %s29, 2
      %s31 = scalar_select %p30, 0, %s29
      %s32 = sadd.s32 1, %s23
      %s33 = scalar_select %p30, %s32, %s23
      %p34 = scmp.ge.s32.totalorder %s33, 2
      %s35 = scalar_select %p34, 0, %s33
      %s37 = sadd.s32 %s36, 1
      %p40 = scmp.eq.s32.totalorder %s16, 3
      %p41 = scmp.ne.s32.totalorder %s36, %s38
      %p42 = scmp.eq.s32.totalorder %s16, 0
      %p43 = por %p41, %p42
      %p44 = scmp.ne.s32.totalorder %s36, %s38
      %p45 = scmp.eq.s32.totalorder %s21, 3
      %p46 = por %p44, %p45
      %p47 = scmp.ne.s32.totalorder %s38, %s39
      %p48 = scmp.eq.s32.totalorder %s21, 0
      %p49 = por %p47, %p48
      %p50 = scmp.ne.s32.totalorder %s38, %s39
      %p51 = scmp.eq.s32.totalorder %s22, 3
      %p52 = por %p50, %p51
      %p54 = scmp.ne.s32.totalorder %s39, %s53
      %p55 = scmp.eq.s32.totalorder %s22, 0
      %p56 = por %p54, %p55
      %s57 = ssub.s32 %s23, %s35
      %s58 = ssub.s32 %s24, %s31
      %s59 = sor.u32 %s57, %s58
      %p60 = scmp.eq.s32.totalorder %s59, 0
      %s62 = sadd.s32 %s61, 1
      %s63 = scalar_select %p60, %s61, %s62
      %p66 = pneg %p60
      %p67 = scmp.eq.s32.totalorder %s16, 3
      %p68 = por %p66, %p67
      %p69 = scmp.ne.s32.totalorder %s61, %s64
      %p70 = scmp.eq.s32.totalorder %s16, 0
      %p71 = por %p69, %p70
      %p72 = scmp.ne.s32.totalorder %s61, %s64
      %p73 = scmp.eq.s32.totalorder %s21, 3
      %p74 = por %p72, %p73
      %p75 = scmp.ne.s32.totalorder %s64, %s65
      %p76 = scmp.eq.s32.totalorder %s21, 0
      %p77 = por %p75, %p76
      %p78 = scmp.ne.s32.totalorder %s64, %s65
      %p79 = scmp.eq.s32.totalorder %s22, 3
      %p80 = por %p78, %p79
      %p82 = scmp.ne.s32.totalorder %s65, %s81
      %p83 = scmp.eq.s32.totalorder %s22, 0
      %p84 = por %p82, %p83
      %s85 = sadd.s32 %s24, 1
      %s86 = sadd.s32 %s31, 1
      %s87 = ssub.s32 %s23, %s35
      %s88 = ssub.s32 %s85, %s86
      %s89 = sor.u32 %s87, %s88
      %p90 = scmp.eq.s32.totalorder %s89, 0
      %s92 = sadd.s32 %s91, 1
      %s93 = scalar_select %p90, %s91, %s92
      %p96 = pneg %p90
      %p97 = scmp.eq.s32.totalorder %s16, 3
      %p98 = por %p96, %p97
      %p99 = scmp.ne.s32.totalorder %s91, %s94
      %p100 = scmp.eq.s32.totalorder %s16, 0
      %p101 = por %p99, %p100
      %p102 = scmp.ne.s32.totalorder %s91, %s94
      %p103 = scmp.eq.s32.totalorder %s21, 3
      %p104 = por %p102, %p103
      %p105 = scmp.ne.s32.totalorder %s94, %s95
      %p106 = scmp.eq.s32.totalorder %s21, 0
      %p107 = por %p105, %p106
      %p108 = scmp.ne.s32.totalorder %s94, %s95
      %p109 = scmp.eq.s32.totalorder %s22, 3
      %p110 = por %p108, %p109
      %p112 = scmp.ne.s32.totalorder %s95, %s111
      %p113 = scmp.eq.s32.totalorder %s22, 0
      %p114 = por %p112, %p113
      %s115 = ssub.s32 %s23, %s35
      %s116 = ssub.s32 %s24, %s31
      %s117 = sor.u32 %s115, %s116
      %p118 = scmp.eq.s32.totalorder %s117, 0
      %s120 = sadd.s32 %s119, 1
      %s121 = scalar_select %p118, %s119, %s120
      %p124 = pneg %p118
      %p125 = scmp.eq.s32.totalorder %s16, 3
      %p126 = por %p124, %p125
      %p127 = scmp.ne.s32.totalorder %s119, %s122
      %p128 = scmp.eq.s32.totalorder %s16, 0
      %p129 = por %p127, %p128
      %p130 = scmp.ne.s32.totalorder %s119, %s122
      %p131 = scmp.eq.s32.totalorder %s21, 3
      %p132 = por %p130, %p131
      %p133 = scmp.ne.s32.totalorder %s122, %s123
      %p134 = scmp.eq.s32.totalorder %s21, 0
      %p135 = por %p133, %p134
      %p136 = scmp.ne.s32.totalorder %s122, %s123
      %p137 = scmp.eq.s32.totalorder %s22, 3
      %p138 = por %p136, %p137
      %p140 = scmp.ne.s32.totalorder %s123, %s139
      %p141 = scmp.eq.s32.totalorder %s22, 0
      %p142 = por %p140, %p141
      %p143 = scmp.le.s32.totalorder 1, %s16
      %p144 = scmp.lt.s32.totalorder %s16, 5
      %p145 = pnand %p143, %p144
      %p146 = pneg %p145
      // Predicated region
      $region9: #{conv2d_std_forward.1} parent=5 // pred_check
        _
      $region10: #{conv2d_std_forward.1} parent=5 // pred_check_branch
        %148 = sbr.rel (%p145) target = $region12
      $region11: #{conv2d_std_forward.1} parent=5 // pred_region
        %s149 = ssub.s32 %s16, 1
        // Predicated region
        $region13: #{conv2d_std_forward.1} parent=11 // pred_check
          %p150 = pneg %p49
        $region14: #{conv2d_std_forward.1} parent=11 // pred_check_branch
          %152 = sbr.rel (%p150) target = $region16
        $region15: #{conv2d_std_forward.1} parent=11 // pred_region
          %s154 = ssub.s32 1152, 1152
          %155 = vsyncadd [#allocation3], %s154
          %s156 = sshll.u32 [#allocation2], 4
          %s157 = int_to_ptr.vmem [resolvable:$true] %s156
          %162 = dma.hbm_to_vmem [thread:$0]  %s0, 1152, %s157, [#allocation3], 128, 128, 8
        $region16: #{conv2d_std_forward.1} parent=11 // pred_fallthru
          _
      $region12: #{conv2d_std_forward.1} parent=5 // pred_fallthru
        _
      %p163 = scmp.lt.s32.totalorder %s16, 4
      // Predicated region
      $region17: #{conv2d_std_forward.1} parent=5 // pred_check
        %p164 = pneg %p163
      $region18: #{conv2d_std_forward.1} parent=5 // pred_check_branch
        %166 = sbr.rel (%p164) target = $region20
      $region19: #{conv2d_std_forward.1} parent=5 // pred_region
        // Predicated region
        $region21: #{conv2d_std_forward.1} parent=19 // pred_check
          %p167 = pneg %p71
        $region22: #{conv2d_std_forward.1} parent=19 // pred_check_branch
          %169 = sbr.rel (%p167) target = $region24
        $region23: #{conv2d_std_forward.1} parent=19 // pred_region
          %s170 = sand.u32 %s16, 1
          %s171 = scalar_lea.sflag [#allocation6], %s170
          %s172 = sand.u32 %s61, 1
          %s173 = smul.addr %s172, 8
          %s174 = scalar_lea.vmem [#allocation5], %s173
          %s175 = smul.u32 2, %s24
          %s177 = ssub.s32 128, 128
          %178 = vsyncadd %s171, %s177
          %s179 = smul.addr %s23, 6
          %s180 = sadd.s32 %s175, %s179
          %s181 = smul.addr %s180, 64
          %s182 = scalar_lea.hbm %s1, %s181
          %s184 = sshll.u32 %s174, 4
          %s185 = int_to_ptr.vmem [resolvable:$true] %s184
          %187 = dma.hbm_to_vmem [thread:$0]  %s182, 128, %s185, %s171
        $region24: #{conv2d_std_forward.1} parent=19 // pred_fallthru
          _
        // Predicated region
        $region25: #{conv2d_std_forward.1} parent=19 // pred_check
          %p188 = pneg %p101
        $region26: #{conv2d_std_forward.1} parent=19 // pred_check_branch
          %190 = sbr.rel (%p188) target = $region28
        $region27: #{conv2d_std_forward.1} parent=19 // pred_region
          %s191 = sand.u32 %s16, 1
          %s192 = scalar_lea.sflag [#allocation6], %s191
          %s193 = sand.u32 %s91, 1
          %s194 = smul.addr %s193, 8
          %s195 = scalar_lea.vmem [#allocation7], %s194
          %s196 = sadd.s32 %s24, 1
          %s197 = smul.u32 2, %s196
          %s199 = ssub.s32 128, 128
          %200 = vsyncadd %s192, %s199
          %s201 = smul.addr %s23, 6
          %s202 = sadd.s32 %s197, %s201
          %s203 = smul.addr %s202, 64
          %s204 = scalar_lea.hbm %s2, %s203
          %s206 = sshll.u32 %s195, 4
          %s207 = int_to_ptr.vmem [resolvable:$true] %s206
          %209 = dma.hbm_to_vmem [thread:$0]  %s204, 128, %s207, %s192
        $region28: #{conv2d_std_forward.1} parent=19 // pred_fallthru
          _
      $region20: #{conv2d_std_forward.1} parent=5 // pred_fallthru
        _
      %p210 = scmp.le.s32.totalorder 1, %s16
      %p211 = scmp.lt.s32.totalorder %s16, 5
      %p212 = pnand %p210, %p211
      %p213 = pneg %p212
      // Predicated region
      $region29: #{conv2d_std_forward.1} parent=5 // pred_check
        _
      $region30: #{conv2d_std_forward.1} parent=5 // pred_check_branch
        %215 = sbr.rel (%p212) target = $region32
      $region31: #{conv2d_std_forward.1} parent=5 // pred_region
        %s216 = ssub.s32 %s16, 1
        // Predicated region
        $region33: #{conv2d_std_forward.1} parent=31 // pred_check
          %p217 = pneg %p49
        $region34: #{conv2d_std_forward.1} parent=31 // pred_check_branch
          %219 = sbr.rel (%p217) target = $region36
        $region35: #{conv2d_std_forward.1} parent=31 // pred_region
          %220 = dma.done [#allocation3], 1152
        $region36: #{conv2d_std_forward.1} parent=31 // pred_fallthru
          _
        %s221 = sand.u32 %s21, 1
        %s222 = scalar_lea.sflag [#allocation6], %s221
        %s223 = sand.u32 %s64, 1
        %s224 = smul.addr %s223, 8
        %s225 = scalar_lea.vmem [#allocation5], %s224
        // Predicated region
        $region37: #{conv2d_std_forward.1} parent=31 // pred_check
          %p226 = pneg %p77
        $region38: #{conv2d_std_forward.1} parent=31 // pred_check_branch
          %228 = sbr.rel (%p226) target = $region40
        $region39: #{conv2d_std_forward.1} parent=31 // pred_region
          %229 = dma.done %s222, 128
        $region40: #{conv2d_std_forward.1} parent=31 // pred_fallthru
          _
        %s230 = sand.u32 %s21, 1
        %s231 = scalar_lea.sflag [#allocation6], %s230
        %s232 = sand.u32 %s94, 1
        %s233 = smul.addr %s232, 8
        %s234 = scalar_lea.vmem [#allocation7], %s233
        // Predicated region
        $region41: #{conv2d_std_forward.1} parent=31 // pred_check
          %p235 = pneg %p107
        $region42: #{conv2d_std_forward.1} parent=31 // pred_check_branch
          %237 = sbr.rel (%p235) target = $region44
        $region43: #{conv2d_std_forward.1} parent=31 // pred_region
          %238 = dma.done %s231, 128
        $region44: #{conv2d_std_forward.1} parent=31 // pred_fallthru
          _
        %p239 = pneg %p49
        %p240 = pneg %p46
        %s241 = sand.u32 %s21, 1
        %s242 = scalar_lea.sflag [#allocation6], %s241
        %s243 = sand.u32 %s64, 1
        %s244 = smul.addr %s243, 8
        %s245 = scalar_lea.vmem [#allocation5], %s244
        %p246 = pneg %p77
        %p247 = pneg %p74
        %s248 = sand.u32 %s21, 1
        %s249 = scalar_lea.sflag [#allocation6], %s248
        %s250 = sand.u32 %s94, 1
        %s251 = smul.addr %s250, 8
        %s252 = scalar_lea.vmem [#allocation7], %s251
        %p253 = pneg %p107
        %p254 = pneg %p104
        %p255 = pneg %p135
        %p256 = pneg %p132
        %s257 = sand.u32 %s122, 1
        %s258 = scalar_lea.sflag [#allocation4], %s257
        %s259 = sand.u32 %s122, 1
        %s260 = smul.addr %s259, 16
        %s261 = scalar_lea.vmem [#allocation8], %s260
        %s262 = smul.u32 2, %s26
        %s263 = sadd.s32 %s26, 1
        %s264 = smul.u32 2, %s263
        %s265 = smul.u32 2, %s26
        %v266 = vld [vmem:[%s225] sm:$0xff]
        %v267 = vld [vmem:[%s234] sm:$0xff]
        %v269 = vcombine.high %v266, %v266
        %v271 = vld [vmem:[#allocation2] sm:$0xff]
        %s272 = scalar_lea.vmem [#allocation2], 8
        %v273 = vld [vmem:[%s272] sm:$0xff]
        %274 = vrot.lane.b32.xlu0 %v266, 127
        %v275 = vpop.permute.xlu0 %274
        %276 = vrot.lane.b32.xlu0 %v269, 127
        %v277 = vpop.permute.xlu0 %276
        %278 = vrot.lane.b32.xlu0 %v267, 127
        %v279 = vpop.permute.xlu0 %278
        %vm280 = vcmask 1039360
        %v281 = vsel %vm280, %v275, %v277
        %v282 = vsel %vm280, %v277, %v279
        %vm283 = vcmask 31744
        %v285 = vsel %vm283, %v273, 0
        %vm287 = vcmask 1043456
        %v288 = vsel %vm287, %v281, 0
        %v290 = vsel %vm287, %v282, 0
        %292 = vmatprep.subr.mxu0 %v290
        %293 = vmatpush1.msra.mxu0 %v288
        %294 = vmatprep.subr.mxu0 0.0
        %295 = vmatpush1.msra.mxu0 0.0
        %296 = vmatprep.subr.mxu0 0.0
        %297 = vmatpush1.msra.mxu0 0.0
        %298 = vmatprep.subr.mxu0 0.0
        %299 = vmatpush1.msra.mxu0 0.0
        %300 = vmatprep.subr.mxu0 0.0
        %301 = vmatpush1.msra.mxu0 0.0
        %302 = vmatprep.subr.mxu0 0.0
        %303 = vmatpush1.msra.mxu0 0.0
        %304 = vmatprep.subr.mxu0 0.0
        %305 = vmatpush1.msra.mxu0 0.0
        %306 = vmatprep.subr.mxu0 0.0
        %307 = vmatpush1.msra.mxu0 0.0
        %308 = vmatprep.subr.mxu0 0.0
        %309 = vmatpush1.msra.mxu0 0.0
        %310 = vmatprep.subr.mxu0 0.0
        %311 = vmatpush1.msra.mxu0 0.0
        %312 = vmatprep.subr.mxu0 0.0
        %313 = vmatpush1.msra.mxu0 0.0
        %314 = vmatprep.subr.mxu0 0.0
        %315 = vmatpush1.msra.mxu0 0.0
        %316 = vmatprep.subr.mxu0 0.0
        %317 = vmatpush1.msra.mxu0 0.0
        %318 = vmatprep.subr.mxu0 0.0
        %319 = vmatpush1.msra.mxu0 0.0
        %320 = vmatprep.subr.mxu0 0.0
        %321 = vmatpush1.msra.mxu0 0.0
        %322 = vmatprep.subr.mxu0 0.0
        %323 = vmatpush1.msra.mxu0 0.0
        %324 = vmatprep.subr.mxu0 0.0
        %325 = vmatpush1.msra.mxu0 0.0
        %326 = vmatprep.subr.mxu0 0.0
        %327 = vmatpush1.msra.mxu0 0.0
        %328 = vmatprep.subr.mxu0 0.0
        %329 = vmatpush1.msra.mxu0 0.0
        %330 = vmatprep.subr.mxu0 0.0
        %331 = vmatpush1.msra.mxu0 0.0
        %332 = vmatprep.subr.mxu0 0.0
        %333 = vmatpush1.msra.mxu0 0.0
        %334 = vmatprep.subr.mxu0 0.0
        %335 = vmatpush1.msra.mxu0 0.0
        %336 = vmatprep.subr.mxu0 0.0
        %337 = vmatpush1.msra.mxu0 0.0
        %338 = vmatprep.subr.mxu0 0.0
        %339 = vmatpush1.msra.mxu0 0.0
        %340 = vmatprep.subr.mxu0 0.0
        %341 = vmatpush1.msra.mxu0 0.0
        %342 = vmatprep.subr.mxu0 0.0
        %343 = vmatpush1.msra.mxu0 0.0
        %344 = vmatprep.subr.mxu0 0.0
        %345 = vmatpush1.msra.mxu0 0.0
        %346 = vmatprep.subr.mxu0 0.0
        %347 = vmatpush1.msra.mxu0 0.0
        %348 = vmatprep.subr.mxu0 0.0
        %349 = vmatpush1.msra.mxu0 0.0
        %350 = vmatprep.subr.mxu0 0.0
        %351 = vmatpush1.msra.mxu0 0.0
        %352 = vmatprep.subr.mxu0 0.0
        %353 = vmatpush1.msra.mxu0 0.0
        %354 = vmatprep.subr.mxu0 0.0
        %355 = vmatpush1.msra.mxu0 0.0
        %356 = vmatprep.mubr.f32.mxu0 0.0
        %357 = vmatmul.mubr.f32.gmra.mrb[0].mxu0 %v285
        %v358 = vpop.f32.mrb[0].mxu0
        %v359 = vadd.f32 0.0, %v358
        %v360 = vpop.f32.mrb[0].mxu0
        %v361 = vadd.f32 0.0, %v360
        %362 = vdwg.mxu0
        %v364 = vsel %vm283, %v271, 0
        %v366 = vsel %vm287, %v266, 0
        %v368 = vsel %vm287, %v269, 0
        %370 = vmatprep.subr.mxu0 %v368
        %371 = vmatpush1.msra.mxu0 %v366
        %372 = vmatprep.subr.mxu0 0.0
        %373 = vmatpush1.msra.mxu0 0.0
        %374 = vmatprep.subr.mxu0 0.0
        %375 = vmatpush1.msra.mxu0 0.0
        %376 = vmatprep.subr.mxu0 0.0
        %377 = vmatpush1.msra.mxu0 0.0
        %378 = vmatprep.subr.mxu0 0.0
        %379 = vmatpush1.msra.mxu0 0.0
        %380 = vmatprep.subr.mxu0 0.0
        %381 = vmatpush1.msra.mxu0 0.0
        %382 = vmatprep.subr.mxu0 0.0
        %383 = vmatpush1.msra.mxu0 0.0
        %384 = vmatprep.subr.mxu0 0.0
        %385 = vmatpush1.msra.mxu0 0.0
        %386 = vmatprep.subr.mxu0 0.0
        %387 = vmatpush1.msra.mxu0 0.0
        %388 = vmatprep.subr.mxu0 0.0
        %389 = vmatpush1.msra.mxu0 0.0
        %390 = vmatprep.subr.mxu0 0.0
        %391 = vmatpush1.msra.mxu0 0.0
        %392 = vmatprep.subr.mxu0 0.0
        %393 = vmatpush1.msra.mxu0 0.0
        %394 = vmatprep.subr.mxu0 0.0
        %395 = vmatpush1.msra.mxu0 0.0
        %396 = vmatprep.subr.mxu0 0.0
        %397 = vmatpush1.msra.mxu0 0.0
        %398 = vmatprep.subr.mxu0 0.0
        %399 = vmatpush1.msra.mxu0 0.0
        %400 = vmatprep.subr.mxu0 0.0
        %401 = vmatpush1.msra.mxu0 0.0
        %402 = vmatprep.subr.mxu0 0.0
        %403 = vmatpush1.msra.mxu0 0.0
        %404 = vmatprep.subr.mxu0 0.0
        %405 = vmatpush1.msra.mxu0 0.0
        %406 = vmatprep.subr.mxu0 0.0
        %407 = vmatpush1.msra.mxu0 0.0
        %408 = vmatprep.subr.mxu0 0.0
        %409 = vmatpush1.msra.mxu0 0.0
        %410 = vmatprep.subr.mxu0 0.0
        %411 = vmatpush1.msra.mxu0 0.0
        %412 = vmatprep.subr.mxu0 0.0
        %413 = vmatpush1.msra.mxu0 0.0
        %414 = vmatprep.subr.mxu0 0.0
        %415 = vmatpush1.msra.mxu0 0.0
        %416 = vmatprep.subr.mxu0 0.0
        %417 = vmatpush1.msra.mxu0 0.0
        %418 = vmatprep.subr.mxu0 0.0
        %419 = vmatpush1.msra.mxu0 0.0
        %420 = vmatprep.subr.mxu0 0.0
        %421 = vmatpush1.msra.mxu0 0.0
        %422 = vmatprep.subr.mxu0 0.0
        %423 = vmatpush1.msra.mxu0 0.0
        %424 = vmatprep.subr.mxu0 0.0
        %425 = vmatpush1.msra.mxu0 0.0
        %426 = vmatprep.subr.mxu0 0.0
        %427 = vmatpush1.msra.mxu0 0.0
        %428 = vmatprep.subr.mxu0 0.0
        %429 = vmatpush1.msra.mxu0 0.0
        %430 = vmatprep.subr.mxu0 0.0
        %431 = vmatpush1.msra.mxu0 0.0
        %432 = vmatprep.subr.mxu0 0.0
        %433 = vmatpush1.msra.mxu0 0.0
        %434 = vmatprep.mubr.f32.mxu0 0.0
        %435 = vmatmul.mubr.f32.gmra.mrb[0].mxu0 %v364
        %v436 = vpop.f32.mrb[0].mxu0
        %v437 = vadd.f32 %v359, %v436
        %v438 = vpop.f32.mrb[0].mxu0
        %v439 = vadd.f32 %v361, %v438
        %440 = vdwg.mxu0
        %s441 = scalar_lea.vmem [#allocation2], 16
        %v442 = vld [vmem:[%s441] sm:$0xff]
        %443 = vrot.lane.b32.xlu0 %v266, 126
        %v444 = vpop.permute.xlu0 %443
        %445 = vrot.lane.b32.xlu0 %v269, 126
        %v446 = vpop.permute.xlu0 %445
        %447 = vrot.lane.b32.xlu0 %v267, 126
        %v448 = vpop.permute.xlu0 %447
        %vm449 = vcmask 1031168
        %v450 = vsel %vm449, %v444, %v446
        %v451 = vsel %vm449, %v446, %v448
        %v453 = vsel %vm283, %v442, 0
        %v455 = vsel %vm287, %v450, 0
        %v457 = vsel %vm287, %v451, 0
        %459 = vmatprep.subr.mxu0 %v457
        %460 = vmatpush1.msra.mxu0 %v455
        %461 = vmatprep.subr.mxu0 0.0
        %462 = vmatpush1.msra.mxu0 0.0
        %463 = vmatprep.subr.mxu0 0.0
        %464 = vmatpush1.msra.mxu0 0.0
        %465 = vmatprep.subr.mxu0 0.0
        %466 = vmatpush1.msra.mxu0 0.0
        %467 = vmatprep.subr.mxu0 0.0
        %468 = vmatpush1.msra.mxu0 0.0
        %469 = vmatprep.subr.mxu0 0.0
        %470 = vmatpush1.msra.mxu0 0.0
        %471 = vmatprep.subr.mxu0 0.0
        %472 = vmatpush1.msra.mxu0 0.0
        %473 = vmatprep.subr.mxu0 0.0
        %474 = vmatpush1.msra.mxu0 0.0
        %475 = vmatprep.subr.mxu0 0.0
        %476 = vmatpush1.msra.mxu0 0.0
        %477 = vmatprep.subr.mxu0 0.0
        %478 = vmatpush1.msra.mxu0 0.0
        %479 = vmatprep.subr.mxu0 0.0
        %480 = vmatpush1.msra.mxu0 0.0
        %481 = vmatprep.subr.mxu0 0.0
        %482 = vmatpush1.msra.mxu0 0.0
        %483 = vmatprep.subr.mxu0 0.0
        %484 = vmatpush1.msra.mxu0 0.0
        %485 = vmatprep.subr.mxu0 0.0
        %486 = vmatpush1.msra.mxu0 0.0
        %487 = vmatprep.subr.mxu0 0.0
        %488 = vmatpush1.msra.mxu0 0.0
        %489 = vmatprep.subr.mxu0 0.0
        %490 = vmatpush1.msra.mxu0 0.0
        %491 = vmatprep.subr.mxu0 0.0
        %492 = vmatpush1.msra.mxu0 0.0
        %493 = vmatprep.subr.mxu0 0.0
        %494 = vmatpush1.msra.mxu0 0.0
        %495 = vmatprep.subr.mxu0 0.0
        %496 = vmatpush1.msra.mxu0 0.0
        %497 = vmatprep.subr.mxu0 0.0
        %498 = vmatpush1.msra.mxu0 0.0
        %499 = vmatprep.subr.mxu0 0.0
        %500 = vmatpush1.msra.mxu0 0.0
        %501 = vmatprep.subr.mxu0 0.0
        %502 = vmatpush1.msra.mxu0 0.0
        %503 = vmatprep.subr.mxu0 0.0
        %504 = vmatpush1.msra.mxu0 0.0
        %505 = vmatprep.subr.mxu0 0.0
        %506 = vmatpush1.msra.mxu0 0.0
        %507 = vmatprep.subr.mxu0 0.0
        %508 = vmatpush1.msra.mxu0 0.0
        %509 = vmatprep.subr.mxu0 0.0
        %510 = vmatpush1.msra.mxu0 0.0
        %511 = vmatprep.subr.mxu0 0.0
        %512 = vmatpush1.msra.mxu0 0.0
        %513 = vmatprep.subr.mxu0 0.0
        %514 = vmatpush1.msra.mxu0 0.0
        %515 = vmatprep.subr.mxu0 0.0
        %516 = vmatpush1.msra.mxu0 0.0
        %517 = vmatprep.subr.mxu0 0.0
        %518 = vmatpush1.msra.mxu0 0.0
        %519 = vmatprep.subr.mxu0 0.0
        %520 = vmatpush1.msra.mxu0 0.0
        %521 = vmatprep.subr.mxu0 0.0
        %522 = vmatpush1.msra.mxu0 0.0
        %523 = vmatprep.mubr.f32.mxu0 0.0
        %524 = vmatmul.mubr.f32.gmra.mrb[0].mxu0 %v453
        %v525 = vpop.f32.mrb[0].mxu0
        %v526 = vadd.f32 0.0, %v525
        %v527 = vpop.f32.mrb[0].mxu0
        %v528 = vadd.f32 0.0, %v527
        %529 = vdwg.mxu0
        %v530 = vadd.f32 %v437, %v526
        %v531 = vadd.f32 %v439, %v528
        %s532 = scalar_lea.vmem [#allocation2], 24
        %v533 = vld [vmem:[%s532] sm:$0xff]
        %534 = vrot.lane.b32.xlu0 %v266, 110
        %v535 = vpop.permute.xlu0 %534
        %536 = vrot.lane.b32.xlu0 %v269, 110
        %v537 = vpop.permute.xlu0 %536
        %538 = vrot.lane.b32.xlu0 %v267, 110
        %v539 = vpop.permute.xlu0 %538
        %vm540 = vcmask 900096
        %v541 = vsel %vm540, %v535, %v537
        %v542 = vsel %vm540, %v537, %v539
        %v544 = vsel %vm283, %v533, 0
        %v546 = vsel %vm287, %v541, 0
        %v548 = vsel %vm287, %v542, 0
        %550 = vmatprep.subr.mxu0 %v548
        %551 = vmatpush1.msra.mxu0 %v546
        %552 = vmatprep.subr.mxu0 0.0
        %553 = vmatpush1.msra.mxu0 0.0
        %554 = vmatprep.subr.mxu0 0.0
        %555 = vmatpush1.msra.mxu0 0.0
        %556 = vmatprep.subr.mxu0 0.0
        %557 = vmatpush1.msra.mxu0 0.0
        %558 = vmatprep.subr.mxu0 0.0
        %559 = vmatpush1.msra.mxu0 0.0
        %560 = vmatprep.subr.mxu0 0.0
        %561 = vmatpush1.msra.mxu0 0.0
        %562 = vmatprep.subr.mxu0 0.0
        %563 = vmatpush1.msra.mxu0 0.0
        %564 = vmatprep.subr.mxu0 0.0
        %565 = vmatpush1.msra.mxu0 0.0
        %566 = vmatprep.subr.mxu0 0.0
        %567 = vmatpush1.msra.mxu0 0.0
        %568 = vmatprep.subr.mxu0 0.0
        %569 = vmatpush1.msra.mxu0 0.0
        %570 = vmatprep.subr.mxu0 0.0
        %571 = vmatpush1.msra.mxu0 0.0
        %572 = vmatprep.subr.mxu0 0.0
        %573 = vmatpush1.msra.mxu0 0.0
        %574 = vmatprep.subr.mxu0 0.0
        %575 = vmatpush1.msra.mxu0 0.0
        %576 = vmatprep.subr.mxu0 0.0
        %577 = vmatpush1.msra.mxu0 0.0
        %578 = vmatprep.subr.mxu0 0.0
        %579 = vmatpush1.msra.mxu0 0.0
        %580 = vmatprep.subr.mxu0 0.0
        %581 = vmatpush1.msra.mxu0 0.0
        %582 = vmatprep.subr.mxu0 0.0
        %583 = vmatpush1.msra.mxu0 0.0
        %584 = vmatprep.subr.mxu0 0.0
        %585 = vmatpush1.msra.mxu0 0.0
        %586 = vmatprep.subr.mxu0 0.0
        %587 = vmatpush1.msra.mxu0 0.0
        %588 = vmatprep.subr.mxu0 0.0
        %589 = vmatpush1.msra.mxu0 0.0
        %590 = vmatprep.subr.mxu0 0.0
        %591 = vmatpush1.msra.mxu0 0.0
        %592 = vmatprep.subr.mxu0 0.0
        %593 = vmatpush1.msra.mxu0 0.0
        %594 = vmatprep.subr.mxu0 0.0
        %595 = vmatpush1.msra.mxu0 0.0
        %596 = vmatprep.subr.mxu0 0.0
        %597 = vmatpush1.msra.mxu0 0.0
        %598 = vmatprep.subr.mxu0 0.0
        %599 = vmatpush1.msra.mxu0 0.0
        %600 = vmatprep.subr.mxu0 0.0
        %601 = vmatpush1.msra.mxu0 0.0
        %602 = vmatprep.subr.mxu0 0.0
        %603 = vmatpush1.msra.mxu0 0.0
        %604 = vmatprep.subr.mxu0 0.0
        %605 = vmatpush1.msra.mxu0 0.0
        %606 = vmatprep.subr.mxu0 0.0
        %607 = vmatpush1.msra.mxu0 0.0
        %608 = vmatprep.subr.mxu0 0.0
        %609 = vmatpush1.msra.mxu0 0.0
        %610 = vmatprep.subr.mxu0 0.0
        %611 = vmatpush1.msra.mxu0 0.0
        %612 = vmatprep.subr.mxu0 0.0
        %613 = vmatpush1.msra.mxu0 0.0
        %614 = vmatprep.mubr.f32.mxu0 0.0
        %615 = vmatmul.mubr.f32.gmra.mrb[0].mxu0 %v544
        %v616 = vpop.f32.mrb[0].mxu0
        %v617 = vadd.f32 0.0, %v616
        %v618 = vpop.f32.mrb[0].mxu0
        %v619 = vadd.f32 0.0, %v618
        %620 = vdwg.mxu0
        %v621 = vadd.f32 %v530, %v617
        %v622 = vadd.f32 %v531, %v619
        %s623 = scalar_lea.vmem [#allocation2], 32
        %v624 = vld [vmem:[%s623] sm:$0xff]
        %625 = vrot.lane.b32.xlu0 %v266, 109
        %v626 = vpop.permute.xlu0 %625
        %627 = vrot.lane.b32.xlu0 %v269, 109
        %v628 = vpop.permute.xlu0 %627
        %629 = vrot.lane.b32.xlu0 %v267, 109
        %v630 = vpop.permute.xlu0 %629
        %vm631 = vcmask 891904
        %v632 = vsel %vm631, %v626, %v628
        %v633 = vsel %vm631, %v628, %v630
        %v635 = vsel %vm283, %v624, 0
        %v637 = vsel %vm287, %v632, 0
        %v639 = vsel %vm287, %v633, 0
        %641 = vmatprep.subr.mxu0 %v639
        %642 = vmatpush1.msra.mxu0 %v637
        %643 = vmatprep.subr.mxu0 0.0
        %644 = vmatpush1.msra.mxu0 0.0
        %645 = vmatprep.subr.mxu0 0.0
        %646 = vmatpush1.msra.mxu0 0.0
        %647 = vmatprep.subr.mxu0 0.0
        %648 = vmatpush1.msra.mxu0 0.0
        %649 = vmatprep.subr.mxu0 0.0
        %650 = vmatpush1.msra.mxu0 0.0
        %651 = vmatprep.subr.mxu0 0.0
        %652 = vmatpush1.msra.mxu0 0.0
        %653 = vmatprep.subr.mxu0 0.0
        %654 = vmatpush1.msra.mxu0 0.0
        %655 = vmatprep.subr.mxu0 0.0
        %656 = vmatpush1.msra.mxu0 0.0
        %657 = vmatprep.subr.mxu0 0.0
        %658 = vmatpush1.msra.mxu0 0.0
        %659 = vmatprep.subr.mxu0 0.0
        %660 = vmatpush1.msra.mxu0 0.0
        %661 = vmatprep.subr.mxu0 0.0
        %662 = vmatpush1.msra.mxu0 0.0
        %663 = vmatprep.subr.mxu0 0.0
        %664 = vmatpush1.msra.mxu0 0.0
        %665 = vmatprep.subr.mxu0 0.0
        %666 = vmatpush1.msra.mxu0 0.0
        %667 = vmatprep.subr.mxu0 0.0
        %668 = vmatpush1.msra.mxu0 0.0
        %669 = vmatprep.subr.mxu0 0.0
        %670 = vmatpush1.msra.mxu0 0.0
        %671 = vmatprep.subr.mxu0 0.0
        %672 = vmatpush1.msra.mxu0 0.0
        %673 = vmatprep.subr.mxu0 0.0
        %674 = vmatpush1.msra.mxu0 0.0
        %675 = vmatprep.subr.mxu0 0.0
        %676 = vmatpush1.msra.mxu0 0.0
        %677 = vmatprep.subr.mxu0 0.0
        %678 = vmatpush1.msra.mxu0 0.0
        %679 = vmatprep.subr.mxu0 0.0
        %680 = vmatpush1.msra.mxu0 0.0
        %681 = vmatprep.subr.mxu0 0.0
        %682 = vmatpush1.msra.mxu0 0.0
        %683 = vmatprep.subr.mxu0 0.0
        %684 = vmatpush1.msra.mxu0 0.0
        %685 = vmatprep.subr.mxu0 0.0
        %686 = vmatpush1.msra.mxu0 0.0
        %687 = vmatprep.subr.mxu0 0.0
        %688 = vmatpush1.msra.mxu0 0.0
        %689 = vmatprep.subr.mxu0 0.0
        %690 = vmatpush1.msra.mxu0 0.0
        %691 = vmatprep.subr.mxu0 0.0
        %692 = vmatpush1.msra.mxu0 0.0
        %693 = vmatprep.subr.mxu0 0.0
        %694 = vmatpush1.msra.mxu0 0.0
        %695 = vmatprep.subr.mxu0 0.0
        %696 = vmatpush1.msra.mxu0 0.0
        %697 = vmatprep.subr.mxu0 0.0
        %698 = vmatpush1.msra.mxu0 0.0
        %699 = vmatprep.subr.mxu0 0.0
        %700 = vmatpush1.msra.mxu0 0.0
        %701 = vmatprep.subr.mxu0 0.0
        %702 = vmatpush1.msra.mxu0 0.0
        %703 = vmatprep.subr.mxu0 0.0
        %704 = vmatpush1.msra.mxu0 0.0
        %705 = vmatprep.mubr.f32.mxu0 0.0
        %706 = vmatmul.mubr.f32.gmra.mrb[0].mxu0 %v635
        %v707 = vpop.f32.mrb[0].mxu0
        %v708 = vadd.f32 0.0, %v707
        %v709 = vpop.f32.mrb[0].mxu0
        %v710 = vadd.f32 0.0, %v709
        %711 = vdwg.mxu0
        %v712 = vadd.f32 %v621, %v708
        %v713 = vadd.f32 %v622, %v710
        %s714 = scalar_lea.vmem [#allocation2], 40
        %v715 = vld [vmem:[%s714] sm:$0xff]
        %716 = vrot.lane.b32.xlu0 %v266, 108
        %v717 = vpop.permute.xlu0 %716
        %718 = vrot.lane.b32.xlu0 %v269, 108
        %v719 = vpop.permute.xlu0 %718
        %720 = vrot.lane.b32.xlu0 %v267, 108
        %v721 = vpop.permute.xlu0 %720
        %vm722 = vcmask 883712
        %v723 = vsel %vm722, %v717, %v719
        %v724 = vsel %vm722, %v719, %v721
        %v726 = vsel %vm283, %v715, 0
        %v728 = vsel %vm287, %v723, 0
        %v730 = vsel %vm287, %v724, 0
        %732 = vmatprep.subr.mxu0 %v730
        %733 = vmatpush1.msra.mxu0 %v728
        %734 = vmatprep.subr.mxu0 0.0
        %735 = vmatpush1.msra.mxu0 0.0
        %736 = vmatprep.subr.mxu0 0.0
        %737 = vmatpush1.msra.mxu0 0.0
        %738 = vmatprep.subr.mxu0 0.0
        %739 = vmatpush1.msra.mxu0 0.0
        %740 = vmatprep.subr.mxu0 0.0
        %741 = vmatpush1.msra.mxu0 0.0
        %742 = vmatprep.subr.mxu0 0.0
        %743 = vmatpush1.msra.mxu0 0.0
        %744 = vmatprep.subr.mxu0 0.0
        %745 = vmatpush1.msra.mxu0 0.0
        %746 = vmatprep.subr.mxu0 0.0
        %747 = vmatpush1.msra.mxu0 0.0
        %748 = vmatprep.subr.mxu0 0.0
        %749 = vmatpush1.msra.mxu0 0.0
        %750 = vmatprep.subr.mxu0 0.0
        %751 = vmatpush1.msra.mxu0 0.0
        %752 = vmatprep.subr.mxu0 0.0
        %753 = vmatpush1.msra.mxu0 0.0
        %754 = vmatprep.subr.mxu0 0.0
        %755 = vmatpush1.msra.mxu0 0.0
        %756 = vmatprep.subr.mxu0 0.0
        %757 = vmatpush1.msra.mxu0 0.0
        %758 = vmatprep.subr.mxu0 0.0
        %759 = vmatpush1.msra.mxu0 0.0
        %760 = vmatprep.subr.mxu0 0.0
        %761 = vmatpush1.msra.mxu0 0.0
        %762 = vmatprep.subr.mxu0 0.0
        %763 = vmatpush1.msra.mxu0 0.0
        %764 = vmatprep.subr.mxu0 0.0
        %765 = vmatpush1.msra.mxu0 0.0
        %766 = vmatprep.subr.mxu0 0.0
        %767 = vmatpush1.msra.mxu0 0.0
        %768 = vmatprep.subr.mxu0 0.0
        %769 = vmatpush1.msra.mxu0 0.0
        %770 = vmatprep.subr.mxu0 0.0
        %771 = vmatpush1.msra.mxu0 0.0
        %772 = vmatprep.subr.mxu0 0.0
        %773 = vmatpush1.msra.mxu0 0.0
        %774 = vmatprep.subr.mxu0 0.0
        %775 = vmatpush1.msra.mxu0 0.0
        %776 = vmatprep.subr.mxu0 0.0
        %777 = vmatpush1.msra.mxu0 0.0
        %778 = vmatprep.subr.mxu0 0.0
        %779 = vmatpush1.msra.mxu0 0.0
        %780 = vmatprep.subr.mxu0 0.0
        %781 = vmatpush1.msra.mxu0 0.0
        %782 = vmatprep.subr.mxu0 0.0
        %783 = vmatpush1.msra.mxu0 0.0
        %784 = vmatprep.subr.mxu0 0.0
        %785 = vmatpush1.msra.mxu0 0.0
        %786 = vmatprep.subr.mxu0 0.0
        %787 = vmatpush1.msra.mxu0 0.0
        %788 = vmatprep.subr.mxu0 0.0
        %789 = vmatpush1.msra.mxu0 0.0
        %790 = vmatprep.subr.mxu0 0.0
        %791 = vmatpush1.msra.mxu0 0.0
        %792 = vmatprep.subr.mxu0 0.0
        %793 = vmatpush1.msra.mxu0 0.0
        %794 = vmatprep.subr.mxu0 0.0
        %795 = vmatpush1.msra.mxu0 0.0
        %796 = vmatprep.mubr.f32.mxu0 0.0
        %797 = vmatmul.mubr.f32.gmra.mrb[0].mxu0 %v726
        %v798 = vpop.f32.mrb[0].mxu0
        %v799 = vadd.f32 0.0, %v798
        %v800 = vpop.f32.mrb[0].mxu0
        %v801 = vadd.f32 0.0, %v800
        %802 = vdwg.mxu0
        %v803 = vadd.f32 %v712, %v799
        %v804 = vadd.f32 %v713, %v801
        %s805 = scalar_lea.vmem [#allocation2], 48
        %v806 = vld [vmem:[%s805] sm:$0xff]
        %807 = vrot.lane.b32.xlu0 %v266, 92
        %v808 = vpop.permute.xlu0 %807
        %809 = vrot.lane.b32.xlu0 %v269, 92
        %v810 = vpop.permute.xlu0 %809
        %811 = vrot.lane.b32.xlu0 %v267, 92
        %v812 = vpop.permute.xlu0 %811
        %vm813 = vcmask 752640
        %v814 = vsel %vm813, %v808, %v810
        %v815 = vsel %vm813, %v810, %v812
        %v817 = vsel %vm283, %v806, 0
        %v819 = vsel %vm287, %v814, 0
        %v821 = vsel %vm287, %v815, 0
        %823 = vmatprep.subr.mxu0 %v821
        %824 = vmatpush1.msra.mxu0 %v819
        %825 = vmatprep.subr.mxu0 0.0
        %826 = vmatpush1.msra.mxu0 0.0
        %827 = vmatprep.subr.mxu0 0.0
        %828 = vmatpush1.msra.mxu0 0.0
        %829 = vmatprep.subr.mxu0 0.0
        %830 = vmatpush1.msra.mxu0 0.0
        %831 = vmatprep.subr.mxu0 0.0
        %832 = vmatpush1.msra.mxu0 0.0
        %833 = vmatprep.subr.mxu0 0.0
        %834 = vmatpush1.msra.mxu0 0.0
        %835 = vmatprep.subr.mxu0 0.0
        %836 = vmatpush1.msra.mxu0 0.0
        %837 = vmatprep.subr.mxu0 0.0
        %838 = vmatpush1.msra.mxu0 0.0
        %839 = vmatprep.subr.mxu0 0.0
        %840 = vmatpush1.msra.mxu0 0.0
        %841 = vmatprep.subr.mxu0 0.0
        %842 = vmatpush1.msra.mxu0 0.0
        %843 = vmatprep.subr.mxu0 0.0
        %844 = vmatpush1.msra.mxu0 0.0
        %845 = vmatprep.subr.mxu0 0.0
        %846 = vmatpush1.msra.mxu0 0.0
        %847 = vmatprep.subr.mxu0 0.0
        %848 = vmatpush1.msra.mxu0 0.0
        %849 = vmatprep.subr.mxu0 0.0
        %850 = vmatpush1.msra.mxu0 0.0
        %851 = vmatprep.subr.mxu0 0.0
        %852 = vmatpush1.msra.mxu0 0.0
        %853 = vmatprep.subr.mxu0 0.0
        %854 = vmatpush1.msra.mxu0 0.0
        %855 = vmatprep.subr.mxu0 0.0
        %856 = vmatpush1.msra.mxu0 0.0
        %857 = vmatprep.subr.mxu0 0.0
        %858 = vmatpush1.msra.mxu0 0.0
        %859 = vmatprep.subr.mxu0 0.0
        %860 = vmatpush1.msra.mxu0 0.0
        %861 = vmatprep.subr.mxu0 0.0
        %862 = vmatpush1.msra.mxu0 0.0
        %863 = vmatprep.subr.mxu0 0.0
        %864 = vmatpush1.msra.mxu0 0.0
        %865 = vmatprep.subr.mxu0 0.0
        %866 = vmatpush1.msra.mxu0 0.0
        %867 = vmatprep.subr.mxu0 0.0
        %868 = vmatpush1.msra.mxu0 0.0
        %869 = vmatprep.subr.mxu0 0.0
        %870 = vmatpush1.msra.mxu0 0.0
        %871 = vmatprep.subr.mxu0 0.0
        %872 = vmatpush1.msra.mxu0 0.0
        %873 = vmatprep.subr.mxu0 0.0
        %874 = vmatpush1.msra.mxu0 0.0
        %875 = vmatprep.subr.mxu0 0.0
        %876 = vmatpush1.msra.mxu0 0.0
        %877 = vmatprep.subr.mxu0 0.0
        %878 = vmatpush1.msra.mxu0 0.0
        %879 = vmatprep.subr.mxu0 0.0
        %880 = vmatpush1.msra.mxu0 0.0
        %881 = vmatprep.subr.mxu0 0.0
        %882 = vmatpush1.msra.mxu0 0.0
        %883 = vmatprep.subr.mxu0 0.0
        %884 = vmatpush1.msra.mxu0 0.0
        %885 = vmatprep.subr.mxu0 0.0
        %886 = vmatpush1.msra.mxu0 0.0
        %887 = vmatprep.mubr.f32.mxu0 0.0
        %888 = vmatmul.mubr.f32.gmra.mrb[0].mxu0 %v817
        %v889 = vpop.f32.mrb[0].mxu0
        %v890 = vadd.f32 0.0, %v889
        %v891 = vpop.f32.mrb[0].mxu0
        %v892 = vadd.f32 0.0, %v891
        %893 = vdwg.mxu0
        %v894 = vadd.f32 %v803, %v890
        %v895 = vadd.f32 %v804, %v892
        %s896 = scalar_lea.vmem [#allocation2], 56
        %v897 = vld [vmem:[%s896] sm:$0xff]
        %898 = vrot.lane.b32.xlu0 %v266, 91
        %v899 = vpop.permute.xlu0 %898
        %900 = vrot.lane.b32.xlu0 %v269, 91
        %v901 = vpop.permute.xlu0 %900
        %902 = vrot.lane.b32.xlu0 %v267, 91
        %v903 = vpop.permute.xlu0 %902
        %vm904 = vcmask 744448
        %v905 = vsel %vm904, %v899, %v901
        %v906 = vsel %vm904, %v901, %v903
        %v908 = vsel %vm283, %v897, 0
        %v910 = vsel %vm287, %v905, 0
        %v912 = vsel %vm287, %v906, 0
        %914 = vmatprep.subr.mxu0 %v912
        %915 = vmatpush1.msra.mxu0 %v910
        %916 = vmatprep.subr.mxu0 0.0
        %917 = vmatpush1.msra.mxu0 0.0
        %918 = vmatprep.subr.mxu0 0.0
        %919 = vmatpush1.msra.mxu0 0.0
        %920 = vmatprep.subr.mxu0 0.0
        %921 = vmatpush1.msra.mxu0 0.0
        %922 = vmatprep.subr.mxu0 0.0
        %923 = vmatpush1.msra.mxu0 0.0
        %924 = vmatprep.subr.mxu0 0.0
        %925 = vmatpush1.msra.mxu0 0.0
        %926 = vmatprep.subr.mxu0 0.0
        %927 = vmatpush1.msra.mxu0 0.0
        %928 = vmatprep.subr.mxu0 0.0
        %929 = vmatpush1.msra.mxu0 0.0
        %930 = vmatprep.subr.mxu0 0.0
        %931 = vmatpush1.msra.mxu0 0.0
        %932 = vmatprep.subr.mxu0 0.0
        %933 = vmatpush1.msra.mxu0 0.0
        %934 = vmatprep.subr.mxu0 0.0
        %935 = vmatpush1.msra.mxu0 0.0
        %936 = vmatprep.subr.mxu0 0.0
        %937 = vmatpush1.msra.mxu0 0.0
        %938 = vmatprep.subr.mxu0 0.0
        %939 = vmatpush1.msra.mxu0 0.0
        %940 = vmatprep.subr.mxu0 0.0
        %941 = vmatpush1.msra.mxu0 0.0
        %942 = vmatprep.subr.mxu0 0.0
        %943 = vmatpush1.msra.mxu0 0.0
        %944 = vmatprep.subr.mxu0 0.0
        %945 = vmatpush1.msra.mxu0 0.0
        %946 = vmatprep.subr.mxu0 0.0
        %947 = vmatpush1.msra.mxu0 0.0
        %948 = vmatprep.subr.mxu0 0.0
        %949 = vmatpush1.msra.mxu0 0.0
        %950 = vmatprep.subr.mxu0 0.0
        %951 = vmatpush1.msra.mxu0 0.0
        %952 = vmatprep.subr.mxu0 0.0
        %953 = vmatpush1.msra.mxu0 0.0
        %954 = vmatprep.subr.mxu0 0.0
        %955 = vmatpush1.msra.mxu0 0.0
        %956 = vmatprep.subr.mxu0 0.0
        %957 = vmatpush1.msra.mxu0 0.0
        %958 = vmatprep.subr.mxu0 0.0
        %959 = vmatpush1.msra.mxu0 0.0
        %960 = vmatprep.subr.mxu0 0.0
        %961 = vmatpush1.msra.mxu0 0.0
        %962 = vmatprep.subr.mxu0 0.0
        %963 = vmatpush1.msra.mxu0 0.0
        %964 = vmatprep.subr.mxu0 0.0
        %965 = vmatpush1.msra.mxu0 0.0
        %966 = vmatprep.subr.mxu0 0.0
        %967 = vmatpush1.msra.mxu0 0.0
        %968 = vmatprep.subr.mxu0 0.0
        %969 = vmatpush1.msra.mxu0 0.0
        %970 = vmatprep.subr.mxu0 0.0
        %971 = vmatpush1.msra.mxu0 0.0
        %972 = vmatprep.subr.mxu0 0.0
        %973 = vmatpush1.msra.mxu0 0.0
        %974 = vmatprep.subr.mxu0 0.0
        %975 = vmatpush1.msra.mxu0 0.0
        %976 = vmatprep.subr.mxu0 0.0
        %977 = vmatpush1.msra.mxu0 0.0
        %978 = vmatprep.mubr.f32.mxu0 0.0
        %979 = vmatmul.mubr.f32.gmra.mrb[0].mxu0 %v908
        %v980 = vpop.f32.mrb[0].mxu0
        %v981 = vadd.f32 0.0, %v980
        %v982 = vpop.f32.mrb[0].mxu0
        %v983 = vadd.f32 0.0, %v982
        %984 = vdwg.mxu0
        %v985 = vadd.f32 %v894, %v981
        %v986 = vadd.f32 %v895, %v983
        %s987 = scalar_lea.vmem [#allocation2], 64
        %v988 = vld [vmem:[%s987] sm:$0xff]
        %989 = vrot.lane.b32.xlu0 %v266, 90
        %v990 = vpop.permute.xlu0 %989
        %991 = vrot.lane.b32.xlu0 %v269, 90
        %v992 = vpop.permute.xlu0 %991
        %993 = vrot.lane.b32.xlu0 %v267, 90
        %v994 = vpop.permute.xlu0 %993
        %vm995 = vcmask 736256
        %v996 = vsel %vm995, %v990, %v992
        %v997 = vsel %vm995, %v992, %v994
        %v999 = vsel %vm283, %v988, 0
        %v1001 = vsel %vm287, %v996, 0
        %v1003 = vsel %vm287, %v997, 0
        %1005 = vmatprep.subr.mxu0 %v1003
        %1006 = vmatpush1.msra.mxu0 %v1001
        %1007 = vmatprep.subr.mxu0 0.0
        %1008 = vmatpush1.msra.mxu0 0.0
        %1009 = vmatprep.subr.mxu0 0.0
        %1010 = vmatpush1.msra.mxu0 0.0
        %1011 = vmatprep.subr.mxu0 0.0
        %1012 = vmatpush1.msra.mxu0 0.0
        %1013 = vmatprep.subr.mxu0 0.0
        %1014 = vmatpush1.msra.mxu0 0.0
        %1015 = vmatprep.subr.mxu0 0.0
        %1016 = vmatpush1.msra.mxu0 0.0
        %1017 = vmatprep.subr.mxu0 0.0
        %1018 = vmatpush1.msra.mxu0 0.0
        %1019 = vmatprep.subr.mxu0 0.0
        %1020 = vmatpush1.msra.mxu0 0.0
        %1021 = vmatprep.subr.mxu0 0.0
        %1022 = vmatpush1.msra.mxu0 0.0
        %1023 = vmatprep.subr.mxu0 0.0
        %1024 = vmatpush1.msra.mxu0 0.0
        %1025 = vmatprep.subr.mxu0 0.0
        %1026 = vmatpush1.msra.mxu0 0.0
        %1027 = vmatprep.subr.mxu0 0.0
        %1028 = vmatpush1.msra.mxu0 0.0
        %1029 = vmatprep.subr.mxu0 0.0
        %1030 = vmatpush1.msra.mxu0 0.0
        %1031 = vmatprep.subr.mxu0 0.0
        %1032 = vmatpush1.msra.mxu0 0.0
        %1033 = vmatprep.subr.mxu0 0.0
        %1034 = vmatpush1.msra.mxu0 0.0
        %1035 = vmatprep.subr.mxu0 0.0
        %1036 = vmatpush1.msra.mxu0 0.0
        %1037 = vmatprep.subr.mxu0 0.0
        %1038 = vmatpush1.msra.mxu0 0.0
        %1039 = vmatprep.subr.mxu0 0.0
        %1040 = vmatpush1.msra.mxu0 0.0
        %1041 = vmatprep.subr.mxu0 0.0
        %1042 = vmatpush1.msra.mxu0 0.0
        %1043 = vmatprep.subr.mxu0 0.0
        %1044 = vmatpush1.msra.mxu0 0.0
        %1045 = vmatprep.subr.mxu0 0.0
        %1046 = vmatpush1.msra.mxu0 0.0
        %1047 = vmatprep.subr.mxu0 0.0
        %1048 = vmatpush1.msra.mxu0 0.0
        %1049 = vmatprep.subr.mxu0 0.0
        %1050 = vmatpush1.msra.mxu0 0.0
        %1051 = vmatprep.subr.mxu0 0.0
        %1052 = vmatpush1.msra.mxu0 0.0
        %1053 = vmatprep.subr.mxu0 0.0
        %1054 = vmatpush1.msra.mxu0 0.0
        %1055 = vmatprep.subr.mxu0 0.0
        %1056 = vmatpush1.msra.mxu0 0.0
        %1057 = vmatprep.subr.mxu0 0.0
        %1058 = vmatpush1.msra.mxu0 0.0
        %1059 = vmatprep.subr.mxu0 0.0
        %1060 = vmatpush1.msra.mxu0 0.0
        %1061 = vmatprep.subr.mxu0 0.0
        %1062 = vmatpush1.msra.mxu0 0.0
        %1063 = vmatprep.subr.mxu0 0.0
        %1064 = vmatpush1.msra.mxu0 0.0
        %1065 = vmatprep.subr.mxu0 0.0
        %1066 = vmatpush1.msra.mxu0 0.0
        %1067 = vmatprep.subr.mxu0 0.0
        %1068 = vmatpush1.msra.mxu0 0.0
        %1069 = vmatprep.mubr.f32.mxu0 0.0
        %1070 = vmatmul.mubr.f32.gmra.mrb[0].mxu0 %v999
        %v1071 = vpop.f32.mrb[0].mxu0
        %v1072 = vadd.f32 0.0, %v1071
        %v1073 = vpop.f32.mrb[0].mxu0
        %v1074 = vadd.f32 0.0, %v1073
        %1075 = vdwg.mxu0
        %v1076 = vadd.f32 %v985, %v1072
        %v1077 = vadd.f32 %v986, %v1074
        %1078 = vst [vmem:[%s261] sm:$0xff] %v1076
        %1079 = vst [vmem:[%s261 + $0x8] sm:$0xff] %v1077
        %s1080 = sand.u32 %s122, 1
        %s1081 = scalar_lea.sflag [#allocation4], %s1080
        %s1082 = sand.u32 %s122, 1
        %s1083 = smul.addr %s1082, 16
        %s1084 = scalar_lea.vmem [#allocation8], %s1083
        // Predicated region
        $region45: #{conv2d_std_forward.1} parent=31 // pred_check
          %p1085 = pneg %p132
        $region46: #{conv2d_std_forward.1} parent=31 // pred_check_branch
          %1087 = sbr.rel (%p1085) target = $region48
        $region47: #{conv2d_std_forward.1} parent=31 // pred_region
          %s1088 = smul.u32 2, %s26
          %s1090 = ssub.s32 256, 256
          %1091 = vsyncadd %s1081, %s1090
          %s1092 = smul.addr %s25, 4
          %s1093 = sadd.s32 %s1088, %s1092
          %s1094 = smul.addr %s1093, 128
          %s1095 = scalar_lea.hbm %s3, %s1094
          %s1097 = sshll.u32 %s1084, 4
          %s1098 = int_to_ptr.vmem [resolvable:$true] %s1097
          %1100 = dma.vmem_to_hbm [thread:$0]  %s1098, 256, %s1095, %s1081
        $region48: #{conv2d_std_forward.1} parent=31 // pred_fallthru
          _
      $region32: #{conv2d_std_forward.1} parent=5 // pred_fallthru
        _
      %p1101 = scmp.le.s32.totalorder 2, %s16
      // Predicated region
      $region49: #{conv2d_std_forward.1} parent=5 // pred_check
        %p1102 = pneg %p1101
      $region50: #{conv2d_std_forward.1} parent=5 // pred_check_branch
        %1104 = sbr.rel (%p1102) target = $region52
      $region51: #{conv2d_std_forward.1} parent=5 // pred_region
        %s1105 = ssub.s32 %s16, 2
        // Predicated region
        $region53: #{conv2d_std_forward.1} parent=51 // pred_check
          %p1106 = pneg %p138
        $region54: #{conv2d_std_forward.1} parent=51 // pred_check_branch
          %1108 = sbr.rel (%p1106) target = $region56
        $region55: #{conv2d_std_forward.1} parent=51 // pred_region
          %s1109 = sand.u32 %s123, 1
          %s1110 = scalar_lea.sflag [#allocation4], %s1109
          %s1111 = sand.u32 %s123, 1
          %s1112 = smul.addr %s1111, 16
          %s1113 = scalar_lea.vmem [#allocation8], %s1112
          %1114 = dma.done %s1110, 256
        $region56: #{conv2d_std_forward.1} parent=51 // pred_fallthru
          _
      $region52: #{conv2d_std_forward.1} parent=5 // pred_fallthru
        _
    $region6: #{conv2d_std_forward.1} parent=1 // loop_footer
      %s20 = sadd.s32 1, %s16
    $region7: #{conv2d_std_forward.1} parent=1 // loop_footer_branch
      %15 = sbr.rel target = $region3
    $region8: #{conv2d_std_forward.1} parent=1 // loop_exit
      _
    %1115 = vsyncpa [#allocation3], 1
    %s1116 = scalar_lea.sflag [#allocation3], 1
    %1117 = vsyncpa %s1116, 1
    %1118 = vsyncpa [#allocation6], 1
    %s1119 = scalar_lea.sflag [#allocation6], 1
    %1120 = vsyncpa %s1119, 1
    %1121 = vsyncpa [#allocation4], 1
    %s1122 = scalar_lea.sflag [#allocation4], 1
    %1123 = vsyncpa %s1122, 1

</llo_original>
